<compile_context>
chip_gen: v7x
topology: tpu7x:2x2x1
jax: 0.10.0
libtpu: 0.0.40
codegen_flags: <defaults>
</compile_context>

<pallas_src>
import functools

import jax
import jax.numpy as jnp
from jax.experimental import pallas as pl
from jax.experimental.pallas import tpu as pltpu

BN_EPS = 1e-5


def _critic_kernel(
    state_ref, action_ref,          # [B, S] bf16, [B, A] bf16
    w1_ref,                         # [S+A, F1] bf16 (merged fcs1 weight)
    w23_ref,                        # [F1+F2, F2] bf16 (w2 rows 0:F1; w3 rows F1:, cols :F3)
    pp_ref,                         # [8, F1] f32 packed small params
    q_ref,                          # [B, 1] f32
    stats_ref,                      # [8, F1] f32 packed batch stats (mu/var per layer)
    x_ref,                          # scratch: [B, S+A] bf16 staging for layer-1 concat
    *, f3,
):
    """3 x [Linear -> BatchNorm(batch stats) -> ReLU] + Linear(.,1) head."""
    s_dim = state_ref.shape[1]
    a_dim = action_ref.shape[1]
    f1 = w1_ref.shape[1]
    f2 = w23_ref.shape[1]

    # Unpack the small per-feature parameter block (static slices of one load).
    pp = pp_ref[...]
    g1, be1 = pp[0:1, :f1], pp[1:2, :f1]
    g2, be2 = pp[2:3, :f2], pp[3:4, :f2]
    g3, be3 = pp[4:5, :f3], pp[5:6, :f3]
    w4_row = pp[6:7, :f3]
    b4 = pp[7:8, 0:1]

    # Zero the stats block once so the narrower layers' unused lanes / rows 6-7
    # are deterministic.
    stats_ref[...] = jnp.zeros_like(stats_ref)

    def bn_relu(h, g, be, row):
        # Training-mode BatchNorm1d: batch mean, biased variance, eps=1e-5.
        # gamma folded into the rsqrt so only one [B, F] multiply is needed.
        f = h.shape[1]
        mu = jnp.mean(h, axis=0, keepdims=True)
        d = h - mu
        var = jnp.mean(d * d, axis=0, keepdims=True)
        stats_ref[row:row + 1, 0:f] = mu
        stats_ref[row + 1:row + 2, 0:f] = var
        scale = g * jax.lax.rsqrt(var + BN_EPS)        # [1, F]
        return jnp.maximum(d * scale + be, 0.0)

    # ---- Layer 1: stage concat(state, action) into VMEM scratch, one MXU pass.
    x_ref[:, 0:s_dim] = state_ref[...]
    x_ref[:, s_dim:s_dim + a_dim] = action_ref[...]
    h1 = jnp.dot(x_ref[...], w1_ref[...], preferred_element_type=jnp.float32)
    h1 = bn_relu(h1, g1, be1, 0)

    # ---- Layer 2.
    w2 = w23_ref[0:f1, :]                              # [F1, F2]
    h2 = jnp.dot(h1.astype(jnp.bfloat16), w2, preferred_element_type=jnp.float32)
    h2 = bn_relu(h2, g2, be2, 2)

    # ---- Layer 3.
    w3 = w23_ref[f1:f1 + f2, 0:f3]                     # [F2, F3]
    h3 = jnp.dot(h2.astype(jnp.bfloat16), w3, preferred_element_type=jnp.float32)
    h3 = bn_relu(h3, g3, be3, 4)

    # ---- Head (out_features == 1): VPU multiply + lane reduction instead of an
    # MXU pass that would use a single output column.
    q = jnp.sum(h3 * w4_row, axis=1, keepdims=True) + b4
    q_ref[...] = q.astype(q_ref.dtype)


def portfolio_critic_forward(state, action, params, return_bn_stats=False):
    """Run the full critic MLP in one gridless Pallas call.

    Returns q [B, 1]; with return_bn_stats=True also returns the packed
    [8, F1] batch-stats block (rows: mu1, var1, mu2, var2, mu3, var3) so the
    caller can perform the BatchNorm running_mean / running_var EMA update
    (PyTorch uses momentum=0.1 and the unbiased variance, i.e. var * B/(B-1)).
    """
    B, s_dim = state.shape
    a_dim = action.shape[1]
    if B < 2:
        raise ValueError("training-mode BatchNorm1d requires batch size >= 2")

    f1 = params["pp"].shape[1]
    f3 = params["f3"]

    kernel = functools.partial(_critic_kernel, f3=f3)
    vmem = pl.BlockSpec(memory_space=pltpu.MemorySpace.VMEM)

    q, stats = pl.pallas_call(
        kernel,
        out_shape=(
            jax.ShapeDtypeStruct((B, 1), jnp.float32),
            jax.ShapeDtypeStruct((8, f1), jnp.float32),
        ),
        in_specs=[vmem] * 5,
        out_specs=(vmem, vmem),
        scratch_shapes=[pltpu.VMEM((B, s_dim + a_dim), jnp.bfloat16)],
    )(
        state.astype(jnp.bfloat16),
        action.astype(jnp.bfloat16),
        params["w1"], params["w23"], params["pp"],
    )
    if return_bn_stats:
        return q, stats
    return q


def init_params(key, state_size, action_size,
                fcs1_units=256, fc2_units=128, fc3_units=64):
    """Mirror PortfolioCritic.reset_parameters().

    Weights stored [in, out] (transpose of nn.Linear.weight), cast to bf16.
    b1/b2/b3 are omitted: PyTorch inits them to 0 AND they are mathematically
    cancelled by the training-mode BatchNorm mean subtraction.

    Packing:
      w1  : [S+A, F1] bf16
      w23 : [F1+F2, F2] bf16  (rows 0:F1 = w2; rows F1:F1+F2, cols 0:F3 = w3)
      pp  : [8, F1] f32  rows: g1, be1, g2, be2, g3, be3, w4, b4(col 0)
    """
    assert fcs1_units >= max(fc2_units, fc3_units, 128)
    assert fc2_units >= fc3_units
    ks = jax.random.split(key, 4)

    def hidden_w(k, fan_in, fan_out):
        lim = 1.0 / jnp.sqrt(jnp.float32(fan_in))
        return jax.random.uniform(k, (fan_in, fan_out), jnp.float32, -lim, lim)

    in1 = state_size + action_size
    w1 = hidden_w(ks[0], in1, fcs1_units)
    w2 = hidden_w(ks[1], fcs1_units, fc2_units)
    w3 = hidden_w(ks[2], fc2_units, fc3_units)
    w4 = jax.random.uniform(ks[3], (fc3_units,), jnp.float32, -3e-4, 3e-4)

    w23 = jnp.zeros((fcs1_units + fc2_units, fc2_units), jnp.float32)
    w23 = w23.at[:fcs1_units, :].set(w2)
    w23 = w23.at[fcs1_units:, :fc3_units].set(w3)

    pp = jnp.zeros((8, fcs1_units), jnp.float32)
    pp = pp.at[0, :fcs1_units].set(1.0)       # g1
    pp = pp.at[2, :fc2_units].set(1.0)        # g2
    pp = pp.at[4, :fc3_units].set(1.0)        # g3
    pp = pp.at[6, :fc3_units].set(w4)         # w4 row
    # be1/be2/be3 rows and b4 are already zero.

    return dict(
        w1=w1.astype(jnp.bfloat16),
        w23=w23.astype(jnp.bfloat16),
        pp=pp,
        f3=fc3_units,                         # static dim (not recoverable from shapes)
    )


def reference_forward(state, action, params):
    """Pure-JAX reference mirroring the kernel math (bf16 matmul operands,
    f32 accumulation / BN). Returns (q, [(mu, var)] * 3)."""
    f1 = params["pp"].shape[1]
    f2 = params["w23"].shape[1]
    f3 = params["f3"]
    pp = params["pp"]
    g1, be1 = pp[0:1, :f1], pp[1:2, :f1]
    g2, be2 = pp[2:3, :f2], pp[3:4, :f2]
    g3, be3 = pp[4:5, :f3], pp[5:6, :f3]
    w4_row = pp[6:7, :f3]
    b4 = pp[7:8, 0:1]
    w1 = params["w1"]
    w2 = params["w23"][:f1, :]
    w3 = params["w23"][f1:, :f3]

    stats = []

    def bn_relu(h, g, be):
        mu = jnp.mean(h, axis=0, keepdims=True)
        d = h - mu
        var = jnp.mean(d * d, axis=0, keepdims=True)
        stats.append((mu, var))
        return jnp.maximum(d * (g * jax.lax.rsqrt(var + BN_EPS)) + be, 0.0)

    x = jnp.concatenate(
        [state.astype(jnp.bfloat16), action.astype(jnp.bfloat16)], axis=1)
    h = bn_relu(jnp.dot(x, w1, preferred_element_type=jnp.float32), g1, be1)
    h = bn_relu(jnp.dot(h.astype(jnp.bfloat16), w2,
                        preferred_element_type=jnp.float32), g2, be2)
    h = bn_relu(jnp.dot(h.astype(jnp.bfloat16), w3,
                        preferred_element_type=jnp.float32), g3, be3)
    q = jnp.sum(h * w4_row, axis=1, keepdims=True) + b4
    return q, stats


if __name__ == "__main__":
    STATE_SIZE = 16
    ACTION_SIZE = 4
    BATCH = 8  # training-mode BatchNorm needs batch > 1

    key = jax.random.PRNGKey(0)
    k_state, k_action, k_params = jax.random.split(key, 3)

    state = jax.random.normal(k_state, (BATCH, STATE_SIZE), jnp.float32)
    action = jax.random.uniform(k_action, (BATCH, ACTION_SIZE), jnp.float32)
    params = init_params(k_params, STATE_SIZE, ACTION_SIZE)

    q, stats = portfolio_critic_forward(state, action, params,
                                        return_bn_stats=True)
    q = jax.block_until_ready(q)

    q_ref, stats_list = reference_forward(state, action, params)
    assert q.shape == (BATCH, 1)
    assert jnp.allclose(q, q_ref, atol=1e-4, rtol=1e-3), (q, q_ref)

    f_dims = (params["pp"].shape[1], params["w23"].shape[1], params["f3"])
    for layer, (mu_r, var_r) in enumerate(stats_list):
        f = f_dims[layer]
        assert jnp.allclose(stats[2 * layer, :f], mu_r[0], atol=1e-4, rtol=1e-3)
        assert jnp.allclose(stats[2 * layer + 1, :f], var_r[0], atol=1e-4, rtol=1e-3)

    # Note: the running_mean/running_var EMA itself (a training-side buffer
    # mutation, not part of this forward's output) is left to the caller,
    # using the exported batch stats (momentum=0.1, unbiased var * B/(B-1)).
    print("KERNEL_OK")
</pallas_src>

<mosaic_0001>
module attributes {stable_mosaic.version = 11 : i64} {
  func.func @_critic_kernel(%arg0: memref<8x16xbf16, #tpu.memory_space<vmem>>, %arg1: memref<8x4xbf16, #tpu.memory_space<vmem>>, %arg2: memref<20x256xbf16, #tpu.memory_space<vmem>>, %arg3: memref<384x128xbf16, #tpu.memory_space<vmem>>, %arg4: memref<8x256xf32, #tpu.memory_space<vmem>>, %arg5: memref<8x1xf32, #tpu.memory_space<vmem>>, %arg6: memref<8x256xf32, #tpu.memory_space<vmem>>, %arg7: memref<8x20xbf16, #tpu.memory_space<vmem>>) attributes {dimension_semantics = [], scalar_prefetch = 0 : i64, scratch_operands = 1 : i64, tpu.core_type = #tpu.core_type<tc>} {
    %c0 = arith.constant 0 : index
    %c0_0 = arith.constant 0 : index
    %0 = vector.load %arg4[%c0, %c0_0] : memref<8x256xf32, #tpu.memory_space<vmem>>, vector<8x256xf32>
    %1 = vector.extract_strided_slice %0 {offsets = [0, 0], sizes = [1, 256], strides = [1, 1]} : vector<8x256xf32> to vector<1x256xf32>
    %2 = vector.extract_strided_slice %0 {offsets = [1, 0], sizes = [1, 256], strides = [1, 1]} : vector<8x256xf32> to vector<1x256xf32>
    %3 = vector.extract_strided_slice %0 {offsets = [2, 0], sizes = [1, 128], strides = [1, 1]} : vector<8x256xf32> to vector<1x128xf32>
    %4 = vector.extract_strided_slice %0 {offsets = [3, 0], sizes = [1, 128], strides = [1, 1]} : vector<8x256xf32> to vector<1x128xf32>
    %5 = vector.extract_strided_slice %0 {offsets = [4, 0], sizes = [1, 64], strides = [1, 1]} : vector<8x256xf32> to vector<1x64xf32>
    %6 = vector.extract_strided_slice %0 {offsets = [5, 0], sizes = [1, 64], strides = [1, 1]} : vector<8x256xf32> to vector<1x64xf32>
    %7 = vector.extract_strided_slice %0 {offsets = [6, 0], sizes = [1, 64], strides = [1, 1]} : vector<8x256xf32> to vector<1x64xf32>
    %8 = vector.extract_strided_slice %0 {offsets = [7, 0], sizes = [1, 1], strides = [1, 1]} : vector<8x256xf32> to vector<1x1xf32>
    %cst = arith.constant 0.000000e+00 : f32
    %9 = vector.broadcast %cst : f32 to vector<8x256xf32>
    %c0_1 = arith.constant 0 : index
    %c0_2 = arith.constant 0 : index
    %10 = vector.load %arg6[%c0_1, %c0_2] : memref<8x256xf32, #tpu.memory_space<vmem>>, vector<8x256xf32>
    tpu.vector_store %arg6[%c0_1, %c0_2], %9 {strides = array<i32>} : memref<8x256xf32, #tpu.memory_space<vmem>>, vector<8x256xf32>,
    %c0_3 = arith.constant 0 : index
    %c0_4 = arith.constant 0 : index
    %11 = vector.load %arg0[%c0_3, %c0_4] : memref<8x16xbf16, #tpu.memory_space<vmem>>, vector<8x16xbf16>
    %c0_5 = arith.constant 0 : index
    %c0_6 = arith.constant 0 : index
    %12 = vector.load %arg7[%c0_5, %c0_6] : memref<8x20xbf16, #tpu.memory_space<vmem>>, vector<8x16xbf16>
    tpu.vector_store %arg7[%c0_5, %c0_6], %11 {strides = array<i32>} : memref<8x20xbf16, #tpu.memory_space<vmem>>, vector<8x16xbf16>,
    %c0_7 = arith.constant 0 : index
    %c0_8 = arith.constant 0 : index
    %13 = vector.load %arg1[%c0_7, %c0_8] : memref<8x4xbf16, #tpu.memory_space<vmem>>, vector<8x4xbf16>
    %c0_9 = arith.constant 0 : index
    %c16 = arith.constant 16 : index
    %14 = vector.load %arg7[%c0_9, %c16] : memref<8x20xbf16, #tpu.memory_space<vmem>>, vector<8x4xbf16>
    tpu.vector_store %arg7[%c0_9, %c16], %13 {strides = array<i32>} : memref<8x20xbf16, #tpu.memory_space<vmem>>, vector<8x4xbf16>,
    %c0_10 = arith.constant 0 : index
    %c0_11 = arith.constant 0 : index
    %15 = vector.load %arg7[%c0_10, %c0_11] : memref<8x20xbf16, #tpu.memory_space<vmem>>, vector<8x20xbf16>
    %c0_12 = arith.constant 0 : index
    %c0_13 = arith.constant 0 : index
    %16 = vector.load %arg2[%c0_12, %c0_13] : memref<20x256xbf16, #tpu.memory_space<vmem>>, vector<20x256xbf16>
    %cst_14 = arith.constant dense<0.000000e+00> : vector<8x256xf32>
    %17 = tpu.matmul %15, %16, %cst_14 {dimension_numbers = #tpu.dot_dimension_numbers<[1], [0], [0], [1], [0, 0, 1, 1], [], []>} : vector<8x20xbf16>, vector<20x256xbf16>, vector<8x256xf32> -> vector<8x256xf32>
    %cst_15 = arith.constant dense<0.000000e+00> : vector<256xf32>
    %18 = vector.multi_reduction <add>, %17, %cst_15 [0] : vector<8x256xf32> to vector<256xf32>
    %19 = vector.shape_cast %18 : vector<256xf32> to vector<1x256xf32>
    %cst_16 = arith.constant 8.000000e+00 : f32
    %20 = vector.broadcast %cst_16 : f32 to vector<1x256xf32>
    %21 = arith.divf %19, %20 : vector<1x256xf32>
    %22 = vector.broadcast %21 : vector<1x256xf32> to vector<8x256xf32>
    %23 = arith.subf %17, %22 : vector<8x256xf32>
    %24 = arith.mulf %23, %23 : vector<8x256xf32>
    %cst_17 = arith.constant dense<0.000000e+00> : vector<256xf32>
    %25 = vector.multi_reduction <add>, %24, %cst_17 [0] : vector<8x256xf32> to vector<256xf32>
    %26 = vector.shape_cast %25 : vector<256xf32> to vector<1x256xf32>
    %cst_18 = arith.constant 8.000000e+00 : f32
    %27 = vector.broadcast %cst_18 : f32 to vector<1x256xf32>
    %28 = arith.divf %26, %27 : vector<1x256xf32>
    %c0_19 = arith.constant 0 : index
    %c0_20 = arith.constant 0 : index
    %29 = vector.load %arg6[%c0_19, %c0_20] : memref<8x256xf32, #tpu.memory_space<vmem>>, vector<1x256xf32>
    tpu.vector_store %arg6[%c0_19, %c0_20], %21 {strides = array<i32>} : memref<8x256xf32, #tpu.memory_space<vmem>>, vector<1x256xf32>,
    %c1 = arith.constant 1 : index
    %c0_21 = arith.constant 0 : index
    %30 = vector.load %arg6[%c1, %c0_21] : memref<8x256xf32, #tpu.memory_space<vmem>>, vector<1x256xf32>
    tpu.vector_store %arg6[%c1, %c0_21], %28 {strides = array<i32>} : memref<8x256xf32, #tpu.memory_space<vmem>>, vector<1x256xf32>,
    %cst_22 = arith.constant 9.99999974E-6 : f32
    %31 = vector.broadcast %cst_22 : f32 to vector<1x256xf32>
    %32 = arith.addf %28, %31 : vector<1x256xf32>
    %33 = math.rsqrt %32 : vector<1x256xf32>
    %34 = arith.mulf %1, %33 : vector<1x256xf32>
    %35 = vector.broadcast %34 : vector<1x256xf32> to vector<8x256xf32>
    %36 = arith.mulf %23, %35 : vector<8x256xf32>
    %37 = vector.broadcast %2 : vector<1x256xf32> to vector<8x256xf32>
    %38 = arith.addf %36, %37 : vector<8x256xf32>
    %cst_23 = arith.constant 0.000000e+00 : f32
    %39 = vector.broadcast %cst_23 : f32 to vector<8x256xf32>
    %40 = arith.maximumf %38, %39 : vector<8x256xf32>
    %c0_24 = arith.constant 0 : index
    %c0_25 = arith.constant 0 : index
    %41 = vector.load %arg3[%c0_24, %c0_25] : memref<384x128xbf16, #tpu.memory_space<vmem>>, vector<256x128xbf16>
    %42 = arith.truncf %40 : vector<8x256xf32> to vector<8x256xbf16>
    %cst_26 = arith.constant dense<0.000000e+00> : vector<8x128xf32>
    %43 = tpu.matmul %42, %41, %cst_26 {dimension_numbers = #tpu.dot_dimension_numbers<[1], [0], [0], [1], [0, 0, 1, 1], [], []>} : vector<8x256xbf16>, vector<256x128xbf16>, vector<8x128xf32> -> vector<8x128xf32>
    %cst_27 = arith.constant dense<0.000000e+00> : vector<128xf32>
    %44 = vector.multi_reduction <add>, %43, %cst_27 [0] : vector<8x128xf32> to vector<128xf32>
    %45 = vector.shape_cast %44 : vector<128xf32> to vector<1x128xf32>
    %cst_28 = arith.constant 8.000000e+00 : f32
    %46 = vector.broadcast %cst_28 : f32 to vector<1x128xf32>
    %47 = arith.divf %45, %46 : vector<1x128xf32>
    %48 = vector.broadcast %47 : vector<1x128xf32> to vector<8x128xf32>
    %49 = arith.subf %43, %48 : vector<8x128xf32>
    %50 = arith.mulf %49, %49 : vector<8x128xf32>
    %cst_29 = arith.constant dense<0.000000e+00> : vector<128xf32>
    %51 = vector.multi_reduction <add>, %50, %cst_29 [0] : vector<8x128xf32> to vector<128xf32>
    %52 = vector.shape_cast %51 : vector<128xf32> to vector<1x128xf32>
    %cst_30 = arith.constant 8.000000e+00 : f32
    %53 = vector.broadcast %cst_30 : f32 to vector<1x128xf32>
    %54 = arith.divf %52, %53 : vector<1x128xf32>
    %c2 = arith.constant 2 : index
    %c0_31 = arith.constant 0 : index
    %55 = vector.load %arg6[%c2, %c0_31] : memref<8x256xf32, #tpu.memory_space<vmem>>, vector<1x128xf32>
    tpu.vector_store %arg6[%c2, %c0_31], %47 {strides = array<i32>} : memref<8x256xf32, #tpu.memory_space<vmem>>, vector<1x128xf32>,
    %c3 = arith.constant 3 : index
    %c0_32 = arith.constant 0 : index
    %56 = vector.load %arg6[%c3, %c0_32] : memref<8x256xf32, #tpu.memory_space<vmem>>, vector<1x128xf32>
    tpu.vector_store %arg6[%c3, %c0_32], %54 {strides = array<i32>} : memref<8x256xf32, #tpu.memory_space<vmem>>, vector<1x128xf32>,
    %cst_33 = arith.constant 9.99999974E-6 : f32
    %57 = vector.broadcast %cst_33 : f32 to vector<1x128xf32>
    %58 = arith.addf %54, %57 : vector<1x128xf32>
    %59 = math.rsqrt %58 : vector<1x128xf32>
    %60 = arith.mulf %3, %59 : vector<1x128xf32>
    %61 = vector.broadcast %60 : vector<1x128xf32> to vector<8x128xf32>
    %62 = arith.mulf %49, %61 : vector<8x128xf32>
    %63 = vector.broadcast %4 : vector<1x128xf32> to vector<8x128xf32>
    %64 = arith.addf %62, %63 : vector<8x128xf32>
    %cst_34 = arith.constant 0.000000e+00 : f32
    %65 = vector.broadcast %cst_34 : f32 to vector<8x128xf32>
    %66 = arith.maximumf %64, %65 : vector<8x128xf32>
    %c256 = arith.constant 256 : index
    %c0_35 = arith.constant 0 : index
    %67 = vector.load %arg3[%c256, %c0_35] : memref<384x128xbf16, #tpu.memory_space<vmem>>, vector<128x64xbf16>
    %68 = arith.truncf %66 : vector<8x128xf32> to vector<8x128xbf16>
    %cst_36 = arith.constant dense<0.000000e+00> : vector<8x64xf32>
    %69 = tpu.matmul %68, %67, %cst_36 {dimension_numbers = #tpu.dot_dimension_numbers<[1], [0], [0], [1], [0, 0, 1, 1], [], []>} : vector<8x128xbf16>, vector<128x64xbf16>, vector<8x64xf32> -> vector<8x64xf32>
    %cst_37 = arith.constant dense<0.000000e+00> : vector<64xf32>
    %70 = vector.multi_reduction <add>, %69, %cst_37 [0] : vector<8x64xf32> to vector<64xf32>
    %71 = vector.shape_cast %70 : vector<64xf32> to vector<1x64xf32>
    %cst_38 = arith.constant 8.000000e+00 : f32
    %72 = vector.broadcast %cst_38 : f32 to vector<1x64xf32>
    %73 = arith.divf %71, %72 : vector<1x64xf32>
    %74 = vector.broadcast %73 : vector<1x64xf32> to vector<8x64xf32>
    %75 = arith.subf %69, %74 : vector<8x64xf32>
    %76 = arith.mulf %75, %75 : vector<8x64xf32>
    %cst_39 = arith.constant dense<0.000000e+00> : vector<64xf32>
    %77 = vector.multi_reduction <add>, %76, %cst_39 [0] : vector<8x64xf32> to vector<64xf32>
    %78 = vector.shape_cast %77 : vector<64xf32> to vector<1x64xf32>
    %cst_40 = arith.constant 8.000000e+00 : f32
    %79 = vector.broadcast %cst_40 : f32 to vector<1x64xf32>
    %80 = arith.divf %78, %79 : vector<1x64xf32>
    %c4 = arith.constant 4 : index
    %c0_41 = arith.constant 0 : index
    %81 = vector.load %arg6[%c4, %c0_41] : memref<8x256xf32, #tpu.memory_space<vmem>>, vector<1x64xf32>
    tpu.vector_store %arg6[%c4, %c0_41], %73 {strides = array<i32>} : memref<8x256xf32, #tpu.memory_space<vmem>>, vector<1x64xf32>,
    %c5 = arith.constant 5 : index
    %c0_42 = arith.constant 0 : index
    %82 = vector.load %arg6[%c5, %c0_42] : memref<8x256xf32, #tpu.memory_space<vmem>>, vector<1x64xf32>
    tpu.vector_store %arg6[%c5, %c0_42], %80 {strides = array<i32>} : memref<8x256xf32, #tpu.memory_space<vmem>>, vector<1x64xf32>,
    %cst_43 = arith.constant 9.99999974E-6 : f32
    %83 = vector.broadcast %cst_43 : f32 to vector<1x64xf32>
    %84 = arith.addf %80, %83 : vector<1x64xf32>
    %85 = math.rsqrt %84 : vector<1x64xf32>
    %86 = arith.mulf %5, %85 : vector<1x64xf32>
    %87 = vector.broadcast %86 : vector<1x64xf32> to vector<8x64xf32>
    %88 = arith.mulf %75, %87 : vector<8x64xf32>
    %89 = vector.broadcast %6 : vector<1x64xf32> to vector<8x64xf32>
    %90 = arith.addf %88, %89 : vector<8x64xf32>
    %cst_44 = arith.constant 0.000000e+00 : f32
    %91 = vector.broadcast %cst_44 : f32 to vector<8x64xf32>
    %92 = arith.maximumf %90, %91 : vector<8x64xf32>
    %93 = vector.broadcast %7 : vector<1x64xf32> to vector<8x64xf32>
    %94 = arith.mulf %92, %93 : vector<8x64xf32>
    %cst_45 = arith.constant dense<0.000000e+00> : vector<8xf32>
    %95 = vector.multi_reduction <add>, %94, %cst_45 [1] : vector<8x64xf32> to vector<8xf32>
    %96 = vector.shape_cast %95 : vector<8xf32> to vector<8x1xf32>
    %97 = vector.broadcast %8 : vector<1x1xf32> to vector<8x1xf32>
    %98 = arith.addf %96, %97 : vector<8x1xf32>
    %c0_46 = arith.constant 0 : index
    %c0_47 = arith.constant 0 : index
    %99 = vector.load %arg5[%c0_46, %c0_47] : memref<8x1xf32, #tpu.memory_space<vmem>>, vector<8x1xf32>
    tpu.vector_store %arg5[%c0_46, %c0_47], %98 {strides = array<i32>} : memref<8x1xf32, #tpu.memory_space<vmem>>, vector<8x1xf32>,
    return
  }
}

</mosaic_0001>

<llo_original>
// kernel: tpu_custom_call.1
$region0: #{tpu_custom_call.1}
  #allocation0 [shape = 'u32[]', space=smem, size = 0x4, offset = 0x4, fixed_abs, tag = 'smem constant byte address 0x4 - core index']
  #allocation1 [shape = 'u32[144,128]{1,0:T(1,128)}', space=vmem, size = 0x12000, scoped, tag = 'internal scratch']
  #allocation2 [shape = 'bf16[8,20]{1,0:T(8,128)(2,1)}', space=vmem, size = 0x800, scoped, tag = 'scratch operand']
  %s0 = inlined_call_operand.vmem [shape: bf16[8,16], index: 0, kind: input, shape index: {}]
  %s1 = inlined_call_operand.vmem [shape: bf16[8,4], index: 1, kind: input, shape index: {}]
  %s2 = inlined_call_operand.hbm [shape: bf16[20,256], index: 2, kind: input, shape index: {}]
  %s3 = inlined_call_operand.hbm [shape: bf16[384,128], index: 3, kind: input, shape index: {}]
  %s4 = inlined_call_operand.vmem [shape: f32[8,256], index: 4, kind: input, shape index: {}]
  %s5 = inlined_call_operand.vmem [shape: f32[8,1], index: 5, kind: output, shape index: {0}]
  %s6 = inlined_call_operand.hbm [shape: f32[8,256], index: 6, kind: output, shape index: {1}]
  %7 = xla_tuple %s5, %s6
  %s8 = sld [smem:[#allocation0]]
  $region46: #{tpu_custom_call.1} parent=0
    _
  %s10 = ssub.s32 1, %s8
  %s11 = scalar_select 0, %s10, %s8
  $region1: #{tpu_custom_call.1} parent=0
    #allocation3 [shape = 'u8[12288]{0}', space=vmem, size = 0x3000, scoped, tag = 'input window, operand 2, single buffered']
    #allocation4 [shape = 's32[1]{0}', space=sflag, size = 0x4, scoped, tag = 'scoped memory for tpu_custom_call.1']
    #allocation5 [shape = 's32[1]{0}', space=sflag, size = 0x4, scoped, tag = 'scoped memory for tpu_custom_call.1']
    #allocation6 [shape = 'u8[98304]{0}', space=vmem, size = 0x18000, scoped, tag = 'input window, operand 3, single buffered']
    #allocation7 [shape = 's32[1]{0}', space=sflag, size = 0x4, scoped, tag = 'scoped memory for tpu_custom_call.1']
    #allocation8 [shape = 'u8[8192]{0}', space=vmem, size = 0x2000, scoped, tag = 'output window, operand 1, single buffered']
    %12 = vsyncpa [#allocation4], 0
    %13 = vsyncpa [#allocation7], 0
    %14 = vsyncpa [#allocation5], 0
    // Predicated region
    $region2: #{tpu_custom_call.1} parent=1 // pred_check
      _
    $region3: #{tpu_custom_call.1} parent=1 // pred_check_branch
      %16 = sbr.rel (0) target = $region5
    $region4: #{tpu_custom_call.1} parent=1 // pred_region
      _
    $region5: #{tpu_custom_call.1} parent=1 // pred_fallthru
      _
    // Predicated region
    $region6: #{tpu_custom_call.1} parent=1 // pred_check
      _
    $region7: #{tpu_custom_call.1} parent=1 // pred_check_branch
      %18 = sbr.rel (0) target = $region9
    $region8: #{tpu_custom_call.1} parent=1 // pred_region
      _
    $region9: #{tpu_custom_call.1} parent=1 // pred_fallthru
      _
    // Predicated region
    $region10: #{tpu_custom_call.1} parent=1 // pred_check
      _
    $region11: #{tpu_custom_call.1} parent=1 // pred_check_branch
      %20 = sbr.rel (0) target = $region13
    $region12: #{tpu_custom_call.1} parent=1 // pred_region
      %s22 = ssub.s32 384, 384
      %23 = vsyncadd [#allocation4], %s22
      %s24 = sshll.u32 [#allocation3], 4
      %s25 = int_to_ptr.vmem [resolvable:$true] %s24
      %30 = dma.hbm_to_vmem [thread:$0]  %s2, 384, %s25, [#allocation4], 128, 128, 8
    $region13: #{tpu_custom_call.1} parent=1 // pred_fallthru
      _
    // Predicated region
    $region14: #{tpu_custom_call.1} parent=1 // pred_check
      _
    $region15: #{tpu_custom_call.1} parent=1 // pred_check_branch
      %32 = sbr.rel (0) target = $region17
    $region16: #{tpu_custom_call.1} parent=1 // pred_region
      %s34 = ssub.s32 3072, 3072
      %35 = vsyncadd [#allocation7], %s34
      %s36 = sshll.u32 [#allocation6], 4
      %s37 = int_to_ptr.vmem [resolvable:$true] %s36
      %42 = dma.hbm_to_vmem [thread:$0]  %s3, 3072, %s37, [#allocation7], 64, 64, 4
    $region17: #{tpu_custom_call.1} parent=1 // pred_fallthru
      _
    // Predicated region
    $region18: #{tpu_custom_call.1} parent=1 // pred_check
      _
    $region19: #{tpu_custom_call.1} parent=1 // pred_check_branch
      %44 = sbr.rel (0) target = $region21
    $region20: #{tpu_custom_call.1} parent=1 // pred_region
      _
    $region21: #{tpu_custom_call.1} parent=1 // pred_fallthru
      _
    // Predicated region
    $region22: #{tpu_custom_call.1} parent=1 // pred_check
      _
    $region23: #{tpu_custom_call.1} parent=1 // pred_check_branch
      %46 = sbr.rel (0) target = $region25
    $region24: #{tpu_custom_call.1} parent=1 // pred_region
      %47 = dma.done [#allocation4], 384
    $region25: #{tpu_custom_call.1} parent=1 // pred_fallthru
      _
    // Predicated region
    $region26: #{tpu_custom_call.1} parent=1 // pred_check
      _
    $region27: #{tpu_custom_call.1} parent=1 // pred_check_branch
      %49 = sbr.rel (0) target = $region29
    $region28: #{tpu_custom_call.1} parent=1 // pred_region
      %50 = dma.done [#allocation7], 3072
    $region29: #{tpu_custom_call.1} parent=1 // pred_fallthru
      _
    %v52 = vld [vmem:[%s4] sm:$0xff]
    %v53 = vld [vmem:[%s4 + $0x8] sm:$0xff]
    %54 = vst [vmem:[#allocation8] sm:$0xff] 0.0
    %55 = vst [vmem:[#allocation8 + $0x8] sm:$0xff] 0.0
    %v56 = vld [vmem:[%s0] sm:$0xf]
    %vm57 = vcmask 125952
    %58 = vst.msk [vmem:[#allocation2] sm:$0xf] %vm57, %v56
    %v59 = vld [vmem:[%s1] sm:$0xf]
    %61 = vrot.lane.b32.xlu0 %v59, 16
    %v62 = vpop.permute.xlu0 %61
    %vm64 = vcmask 158848
    %65 = vst.msk [vmem:[#allocation2] sm:$0xf] %vm64, %v62
    %v66 = vld [vmem:[#allocation2] sm:$0xf]
    %v67 = vld [vmem:[#allocation3] sm:$0xff]
    %v68 = vld [vmem:[#allocation3 + $0x8] sm:$0xff]
    %v69 = vld [vmem:[#allocation3 + $0x10] sm:$0x33]
    %v73 = vunpack.c.l.b16 %v67
    %v74 = vunpack.c.h.b16 %v67
    %v75 = vunpack.c.l.b16 %v68
    %v76 = vunpack.c.h.b16 %v68
    %v77 = vunpack.c.l.b16 %v69
    %v78 = vunpack.c.h.b16 %v69
    %v79 = vpack.c.b16 %v75, %v73
    %v80 = vpack.c.b16 %v76, %v74
    %v81 = vpack.c.b16 %v77, %v77
    %v82 = vpack.c.b16 %v78, %v78
    %vm85 = vcmask 162816
    %v87 = vsel %vm85, %v66, 0
    %vm89 = vcmask 1041408
    %v91 = vsel %vm89, %v81, 0
    %v94 = vsel %vm89, %v82, 0
    %96 = vmatprep.subr.bf16.mxu0 %v80
    %97 = vmatpush1.bf16.msra.mxu0 %v79
    %98 = vmatprep.subr.bf16.mxu0 %v94
    %99 = vmatpush1.bf16.msra.mxu0 %v91
    %100 = vmatprep.subr.bf16.mxu0 0
    %101 = vmatpush1.bf16.msra.mxu0 0
    %102 = vmatprep.subr.bf16.mxu0 0
    %103 = vmatpush1.bf16.msra.mxu0 0
    %104 = vmatprep.subr.bf16.mxu0 0
    %105 = vmatpush1.bf16.msra.mxu0 0
    %106 = vmatprep.subr.bf16.mxu0 0
    %107 = vmatpush1.bf16.msra.mxu0 0
    %108 = vmatprep.subr.bf16.mxu0 0
    %109 = vmatpush1.bf16.msra.mxu0 0
    %110 = vmatprep.subr.bf16.mxu0 0
    %111 = vmatpush1.bf16.msra.mxu0 0
    %112 = vmatprep.subr.bf16.mxu0 0
    %113 = vmatpush1.bf16.msra.mxu0 0
    %114 = vmatprep.subr.bf16.mxu0 0
    %115 = vmatpush1.bf16.msra.mxu0 0
    %116 = vmatprep.subr.bf16.mxu0 0
    %117 = vmatpush1.bf16.msra.mxu0 0
    %118 = vmatprep.subr.bf16.mxu0 0
    %119 = vmatpush1.bf16.msra.mxu0 0
    %120 = vmatprep.subr.bf16.mxu0 0
    %121 = vmatpush1.bf16.msra.mxu0 0
    %122 = vmatprep.subr.bf16.mxu0 0
    %123 = vmatpush1.bf16.msra.mxu0 0
    %124 = vmatprep.subr.bf16.mxu0 0
    %125 = vmatpush1.bf16.msra.mxu0 0
    %126 = vmatprep.subr.bf16.mxu0 0
    %127 = vmatpush1.bf16.msra.mxu0 0
    %128 = vmatprep.mubr.bf16.mxu0 0
    %129 = vmatmul.mubr.bf16.gmra.mrb[0].mxu0 %v87
    %v130 = vpop.f32.mrb[0].mxu0
    %v131 = vadd.f32 0.0, %v130
    %v132 = vpop.f32.mrb[0].mxu0
    %v133 = vadd.f32 0.0, %v132
    %v134 = vpop.f32.mrb[0].mxu0
    %v135 = vpop.f32.mrb[0].mxu0
    %136 = vdwg.mxu0
    %v137 = vrot.slane %v131, 4
    %v138 = vadd.f32 %v131, %v137
    %v139 = vrot.slane %v138, 2
    %v140 = vadd.f32 %v138, %v139
    %v141 = vrot.slane %v140, 1
    %v142 = vadd.f32 %v140, %v141
    %v143 = vrot.slane %v133, 4
    %v144 = vadd.f32 %v133, %v143
    %v145 = vrot.slane %v144, 2
    %v146 = vadd.f32 %v144, %v145
    %v147 = vrot.slane %v146, 1
    %v148 = vadd.f32 %v146, %v147
    %v149 = vrcp.pop 8.0
    %v150 = vmul.f32 %v142, %v149
    %v151 = vmul.f32 %v148, %v149
    %v152 = vsub.f32 %v131, %v150
    %v153 = vsub.f32 %v133, %v151
    %v154 = vmul.f32 %v152, %v152
    %v155 = vmul.f32 %v153, %v153
    %v156 = vrot.slane %v154, 4
    %v157 = vadd.f32 %v154, %v156
    %v158 = vrot.slane %v157, 2
    %v159 = vadd.f32 %v157, %v158
    %v160 = vrot.slane %v159, 1
    %v161 = vadd.f32 %v159, %v160
    %v162 = vrot.slane %v155, 4
    %v163 = vadd.f32 %v155, %v162
    %v164 = vrot.slane %v163, 2
    %v165 = vadd.f32 %v163, %v164
    %v166 = vrot.slane %v165, 1
    %v167 = vadd.f32 %v165, %v166
    %v168 = vmul.f32 %v161, %v149
    %v169 = vmul.f32 %v167, %v149
    %v172 = vcombine.low %v150, %v151
    %v174 = vunpack.c.l.s4 1966171168
    %v175 = vunpack.c.0.s8 %v174
    %v176 = vlaneseq
    %v177 = vshrl.u32 %v176, 7
    %v178 = vsub.s32 %v175, %v177
    %v179 = vrot.slane %v172, %v178
    %v181 = vunpack.c.l.s4 1966171168
    %v182 = vunpack.c.0.s8 %v181
    %v183 = vlaneseq
    %v184 = vshrl.u32 %v183, 7
    %v185 = vsub.s32 %v182, %v184
    %v186 = vrot.slane %v179, %v185
    %v188 = vlaneseq
    %vm189 = vcmp.ge.s32.totalorder %v188, 0
    %vm190 = vcmp.lt.s32.totalorder %v188, 256
    %vm191 = vmand %vm189, %vm190
    %192 = vst.msk [vmem:[#allocation8] ss:$8 sm:$0x3] %vm191, %v186
    %193 = vst.msk [vmem:[#allocation8] ss:$8 sm:$0x0] %vm191, %v186
    %v196 = vcombine.low %v168, %v169
    %v198 = vunpack.c.l.s4 1966171168
    %v199 = vunpack.c.0.s8 %v198
    %v200 = vlaneseq
    %v201 = vshrl.u32 %v200, 7
    %v202 = vsub.s32 %v199, %v201
    %v203 = vrot.slane %v196, %v202
    %v205 = vunpack.c.l.s4 1966171168
    %v206 = vunpack.c.0.s8 %v205
    %v207 = vlaneseq
    %v208 = vshrl.u32 %v207, 7
    %v209 = vsub.s32 %v206, %v208
    %v210 = vrot.slane %v203, %v209
    %s212 = scalar_lea.vmem [#allocation8], 1
    %213 = vst.msk [vmem:[%s212] ss:$8 sm:$0x3] %vm191, %v210
    %214 = vst.msk [vmem:[%s212] ss:$8 sm:$0x0] %vm191, %v210
    %v215 = vadd.f32 %v168, 1e-05
    %v216 = vadd.f32 %v169, 1e-05
    %v217 = vrsqrt.pop %v215
    %v218 = vrsqrt.pop %v216
    %v219 = vmul.f32 %v52, %v217
    %v220 = vmul.f32 %v53, %v218
    %v221 = vlaneseq
    %v222 = vshrl.u32 %v221, 7
    %v223 = vsub.s32 0, %v222
    %v224 = vrot.slane %v219, %v223
    %v225 = vlaneseq
    %v226 = vshrl.u32 %v225, 7
    %v227 = vsub.s32 0, %v226
    %v228 = vrot.slane %v220, %v227
    %v229 = vmul.f32 %v152, %v224
    %v230 = vmul.f32 %v153, %v228
    %v231 = vlaneseq
    %v232 = vshrl.u32 %v231, 7
    %v233 = vsub.s32 1, %v232
    %v234 = vrot.slane %v52, %v233
    %v235 = vlaneseq
    %v236 = vshrl.u32 %v235, 7
    %v237 = vsub.s32 1, %v236
    %v238 = vrot.slane %v53, %v237
    %v239 = vadd.f32 %v229, %v234
    %v240 = vadd.f32 %v230, %v238
    %v241 = vmax.f32 %v239, 0.0
    %v242 = vmax.f32 %v240, 0.0
    %v243 = vld [vmem:[#allocation6] sm:$0xf]
    %v244 = vld [vmem:[#allocation6 + $0x4] sm:$0xf]
    %v245 = vld [vmem:[#allocation6 + $0x8] sm:$0xf]
    %v246 = vld [vmem:[#allocation6 + $0xc] sm:$0xf]
    %v247 = vld [vmem:[#allocation6 + $0x10] sm:$0xf]
    %v248 = vld [vmem:[#allocation6 + $0x14] sm:$0xf]
    %v249 = vld [vmem:[#allocation6 + $0x18] sm:$0xf]
    %v250 = vld [vmem:[#allocation6 + $0x1c] sm:$0xf]
    %v251 = vld [vmem:[#allocation6 + $0x20] sm:$0xf]
    %v252 = vld [vmem:[#allocation6 + $0x24] sm:$0xf]
    %v253 = vld [vmem:[#allocation6 + $0x28] sm:$0xf]
    %v254 = vld [vmem:[#allocation6 + $0x2c] sm:$0xf]
    %v255 = vld [vmem:[#allocation6 + $0x30] sm:$0xf]
    %v256 = vld [vmem:[#allocation6 + $0x34] sm:$0xf]
    %v257 = vld [vmem:[#allocation6 + $0x38] sm:$0xf]
    %v258 = vld [vmem:[#allocation6 + $0x3c] sm:$0xf]
    %v259 = vld [vmem:[#allocation6 + $0x40] sm:$0xf]
    %v260 = vld [vmem:[#allocation6 + $0x44] sm:$0xf]
    %v261 = vld [vmem:[#allocation6 + $0x48] sm:$0xf]
    %v262 = vld [vmem:[#allocation6 + $0x4c] sm:$0xf]
    %v263 = vld [vmem:[#allocation6 + $0x50] sm:$0xf]
    %v264 = vld [vmem:[#allocation6 + $0x54] sm:$0xf]
    %v265 = vld [vmem:[#allocation6 + $0x58] sm:$0xf]
    %v266 = vld [vmem:[#allocation6 + $0x5c] sm:$0xf]
    %v267 = vld [vmem:[#allocation6 + $0x60] sm:$0xf]
    %v268 = vld [vmem:[#allocation6 + $0x64] sm:$0xf]
    %v269 = vld [vmem:[#allocation6 + $0x68] sm:$0xf]
    %v270 = vld [vmem:[#allocation6 + $0x6c] sm:$0xf]
    %v271 = vld [vmem:[#allocation6 + $0x70] sm:$0xf]
    %v272 = vld [vmem:[#allocation6 + $0x74] sm:$0xf]
    %v273 = vld [vmem:[#allocation6 + $0x78] sm:$0xf]
    %v274 = vld [vmem:[#allocation6 + $0x7c] sm:$0xf]
    %v275 = vpack.c.bf16 %v241, %v241
    %v276 = vpack.c.bf16 %v242, %v242
    %v309 = vunpack.c.l.b16 %v243
    %v310 = vunpack.c.l.b16 %v244
    %v311 = vunpack.c.l.b16 %v245
    %v312 = vunpack.c.l.b16 %v246
    %v313 = vunpack.c.l.b16 %v247
    %v314 = vunpack.c.l.b16 %v248
    %v315 = vunpack.c.l.b16 %v249
    %v316 = vunpack.c.l.b16 %v250
    %v317 = vunpack.c.l.b16 %v251
    %v318 = vunpack.c.l.b16 %v252
    %v319 = vunpack.c.l.b16 %v253
    %v320 = vunpack.c.l.b16 %v254
    %v321 = vunpack.c.l.b16 %v255
    %v322 = vunpack.c.l.b16 %v256
    %v323 = vunpack.c.l.b16 %v257
    %v324 = vunpack.c.l.b16 %v258
    %v325 = vunpack.c.l.b16 %v259
    %v326 = vunpack.c.l.b16 %v260
    %v327 = vunpack.c.l.b16 %v261
    %v328 = vunpack.c.l.b16 %v262
    %v329 = vunpack.c.l.b16 %v263
    %v330 = vunpack.c.l.b16 %v264
    %v331 = vunpack.c.l.b16 %v265
    %v332 = vunpack.c.l.b16 %v266
    %v333 = vunpack.c.l.b16 %v267
    %v334 = vunpack.c.l.b16 %v268
    %v335 = vunpack.c.l.b16 %v269
    %v336 = vunpack.c.l.b16 %v270
    %v337 = vunpack.c.l.b16 %v271
    %v338 = vunpack.c.l.b16 %v272
    %v339 = vunpack.c.l.b16 %v273
    %v340 = vunpack.c.l.b16 %v274
    %v341 = vpack.c.b16 %v310, %v309
    %v342 = vpack.c.b16 %v312, %v311
    %v343 = vpack.c.b16 %v314, %v313
    %v344 = vpack.c.b16 %v316, %v315
    %v345 = vpack.c.b16 %v318, %v317
    %v346 = vpack.c.b16 %v320, %v319
    %v347 = vpack.c.b16 %v322, %v321
    %v348 = vpack.c.b16 %v324, %v323
    %v349 = vpack.c.b16 %v326, %v325
    %v350 = vpack.c.b16 %v328, %v327
    %v351 = vpack.c.b16 %v330, %v329
    %v352 = vpack.c.b16 %v332, %v331
    %v353 = vpack.c.b16 %v334, %v333
    %v354 = vpack.c.b16 %v336, %v335
    %v355 = vpack.c.b16 %v338, %v337
    %v356 = vpack.c.b16 %v340, %v339
    %373 = vmatprep.subr.bf16.mxu0 0
    %374 = vmatpush1.bf16.msra.mxu0 %v341
    %375 = vmatprep.subr.bf16.mxu0 0
    %376 = vmatpush1.bf16.msra.mxu0 %v342
    %377 = vmatprep.subr.bf16.mxu0 0
    %378 = vmatpush1.bf16.msra.mxu0 %v343
    %379 = vmatprep.subr.bf16.mxu0 0
    %380 = vmatpush1.bf16.msra.mxu0 %v344
    %381 = vmatprep.subr.bf16.mxu0 0
    %382 = vmatpush1.bf16.msra.mxu0 %v345
    %383 = vmatprep.subr.bf16.mxu0 0
    %384 = vmatpush1.bf16.msra.mxu0 %v346
    %385 = vmatprep.subr.bf16.mxu0 0
    %386 = vmatpush1.bf16.msra.mxu0 %v347
    %387 = vmatprep.subr.bf16.mxu0 0
    %388 = vmatpush1.bf16.msra.mxu0 %v348
    %389 = vmatprep.subr.bf16.mxu0 0
    %390 = vmatpush1.bf16.msra.mxu0 %v349
    %391 = vmatprep.subr.bf16.mxu0 0
    %392 = vmatpush1.bf16.msra.mxu0 %v350
    %393 = vmatprep.subr.bf16.mxu0 0
    %394 = vmatpush1.bf16.msra.mxu0 %v351
    %395 = vmatprep.subr.bf16.mxu0 0
    %396 = vmatpush1.bf16.msra.mxu0 %v352
    %397 = vmatprep.subr.bf16.mxu0 0
    %398 = vmatpush1.bf16.msra.mxu0 %v353
    %399 = vmatprep.subr.bf16.mxu0 0
    %400 = vmatpush1.bf16.msra.mxu0 %v354
    %401 = vmatprep.subr.bf16.mxu0 0
    %402 = vmatpush1.bf16.msra.mxu0 %v355
    %403 = vmatprep.subr.bf16.mxu0 0
    %404 = vmatpush1.bf16.msra.mxu0 %v356
    %405 = vmatprep.mubr.bf16.mxu0 %v276
    %406 = vmatmul.mubr.bf16.gmra.mrb[0].mxu0 %v275
    %v407 = vpop.f32.mrb[0].mxu0
    %v408 = vadd.f32 0.0, %v407
    %v409 = vpop.f32.mrb[0].mxu0
    %v410 = vpop.f32.mrb[0].mxu0
    %v411 = vpop.f32.mrb[0].mxu0
    %412 = vdwg.mxu0
    %v413 = vrot.slane %v408, 4
    %v414 = vadd.f32 %v408, %v413
    %v415 = vrot.slane %v414, 2
    %v416 = vadd.f32 %v414, %v415
    %v417 = vrot.slane %v416, 1
    %v418 = vadd.f32 %v416, %v417
    %v419 = vmul.f32 %v418, %v149
    %v420 = vsub.f32 %v408, %v419
    %v421 = vmul.f32 %v420, %v420
    %v422 = vrot.slane %v421, 4
    %v423 = vadd.f32 %v421, %v422
    %v424 = vrot.slane %v423, 2
    %v425 = vadd.f32 %v423, %v424
    %v426 = vrot.slane %v425, 1
    %v427 = vadd.f32 %v425, %v426
    %v428 = vmul.f32 %v427, %v149
    %429 = vst [vmem:[#allocation8 + $0x2] sm:$0x1] %v419
    %430 = vst [vmem:[#allocation8 + $0x3] sm:$0x1] %v428
    %v431 = vadd.f32 %v428, 1e-05
    %v432 = vrsqrt.pop %v431
    %v433 = vmul.f32 %v52, %v432
    %v434 = vlaneseq
    %v435 = vshrl.u32 %v434, 7
    %v436 = vsub.s32 2, %v435
    %v437 = vrot.slane %v433, %v436
    %v438 = vmul.f32 %v420, %v437
    %v439 = vlaneseq
    %v440 = vshrl.u32 %v439, 7
    %v441 = vsub.s32 3, %v440
    %v442 = vrot.slane %v52, %v441
    %v443 = vadd.f32 %v438, %v442
    %v444 = vmax.f32 %v443, 0.0
    %v445 = vld [vmem:[#allocation6 + $0x80] sm:$0xf]
    %v446 = vld [vmem:[#allocation6 + $0x84] sm:$0xf]
    %v447 = vld [vmem:[#allocation6 + $0x88] sm:$0xf]
    %v448 = vld [vmem:[#allocation6 + $0x8c] sm:$0xf]
    %v449 = vld [vmem:[#allocation6 + $0x90] sm:$0xf]
    %v450 = vld [vmem:[#allocation6 + $0x94] sm:$0xf]
    %v451 = vld [vmem:[#allocation6 + $0x98] sm:$0xf]
    %v452 = vld [vmem:[#allocation6 + $0x9c] sm:$0xf]
    %v453 = vld [vmem:[#allocation6 + $0xa0] sm:$0xf]
    %v454 = vld [vmem:[#allocation6 + $0xa4] sm:$0xf]
    %v455 = vld [vmem:[#allocation6 + $0xa8] sm:$0xf]
    %v456 = vld [vmem:[#allocation6 + $0xac] sm:$0xf]
    %v457 = vld [vmem:[#allocation6 + $0xb0] sm:$0xf]
    %v458 = vld [vmem:[#allocation6 + $0xb4] sm:$0xf]
    %v459 = vld [vmem:[#allocation6 + $0xb8] sm:$0xf]
    %v460 = vld [vmem:[#allocation6 + $0xbc] sm:$0xf]
    %v461 = vpack.c.bf16 %v444, %v444
    %v478 = vunpack.c.l.b16 %v445
    %v479 = vunpack.c.l.b16 %v446
    %v480 = vunpack.c.l.b16 %v447
    %v481 = vunpack.c.l.b16 %v448
    %v482 = vunpack.c.l.b16 %v449
    %v483 = vunpack.c.l.b16 %v450
    %v484 = vunpack.c.l.b16 %v451
    %v485 = vunpack.c.l.b16 %v452
    %v486 = vunpack.c.l.b16 %v453
    %v487 = vunpack.c.l.b16 %v454
    %v488 = vunpack.c.l.b16 %v455
    %v489 = vunpack.c.l.b16 %v456
    %v490 = vunpack.c.l.b16 %v457
    %v491 = vunpack.c.l.b16 %v458
    %v492 = vunpack.c.l.b16 %v459
    %v493 = vunpack.c.l.b16 %v460
    %v494 = vpack.c.b16 %v479, %v478
    %v495 = vpack.c.b16 %v481, %v480
    %v496 = vpack.c.b16 %v483, %v482
    %v497 = vpack.c.b16 %v485, %v484
    %v498 = vpack.c.b16 %v487, %v486
    %v499 = vpack.c.b16 %v489, %v488
    %v500 = vpack.c.b16 %v491, %v490
    %v501 = vpack.c.b16 %v493, %v492
    %510 = vmatprep.subr.bf16.mxu0 0
    %511 = vmatpush1.bf16.msra.mxu0 %v494
    %512 = vmatprep.subr.bf16.mxu0 0
    %513 = vmatpush1.bf16.msra.mxu0 %v495
    %514 = vmatprep.subr.bf16.mxu0 0
    %515 = vmatpush1.bf16.msra.mxu0 %v496
    %516 = vmatprep.subr.bf16.mxu0 0
    %517 = vmatpush1.bf16.msra.mxu0 %v497
    %518 = vmatprep.subr.bf16.mxu0 0
    %519 = vmatpush1.bf16.msra.mxu0 %v498
    %520 = vmatprep.subr.bf16.mxu0 0
    %521 = vmatpush1.bf16.msra.mxu0 %v499
    %522 = vmatprep.subr.bf16.mxu0 0
    %523 = vmatpush1.bf16.msra.mxu0 %v500
    %524 = vmatprep.subr.bf16.mxu0 0
    %525 = vmatpush1.bf16.msra.mxu0 %v501
    %526 = vmatprep.subr.bf16.mxu0 0
    %527 = vmatpush1.bf16.msra.mxu0 0
    %528 = vmatprep.subr.bf16.mxu0 0
    %529 = vmatpush1.bf16.msra.mxu0 0
    %530 = vmatprep.subr.bf16.mxu0 0
    %531 = vmatpush1.bf16.msra.mxu0 0
    %532 = vmatprep.subr.bf16.mxu0 0
    %533 = vmatpush1.bf16.msra.mxu0 0
    %534 = vmatprep.subr.bf16.mxu0 0
    %535 = vmatpush1.bf16.msra.mxu0 0
    %536 = vmatprep.subr.bf16.mxu0 0
    %537 = vmatpush1.bf16.msra.mxu0 0
    %538 = vmatprep.subr.bf16.mxu0 0
    %539 = vmatpush1.bf16.msra.mxu0 0
    %540 = vmatprep.subr.bf16.mxu0 0
    %541 = vmatpush1.bf16.msra.mxu0 0
    %542 = vmatprep.mubr.bf16.mxu0 0
    %543 = vmatmul.mubr.bf16.gmra.mrb[0].mxu0 %v461
    %v544 = vpop.f32.mrb[0].mxu0
    %v545 = vadd.f32 0.0, %v544
    %v546 = vpop.f32.mrb[0].mxu0
    %v547 = vpop.f32.mrb[0].mxu0
    %v548 = vpop.f32.mrb[0].mxu0
    %549 = vdwg.mxu0
    %vm550 = vcmask 523264
    %v551 = vsel %vm550, %v545, 0.0
    %v552 = vrot.slane %v551, 4
    %v553 = vadd.f32 %v551, %v552
    %v554 = vrot.slane %v553, 2
    %v555 = vadd.f32 %v553, %v554
    %v556 = vrot.slane %v555, 1
    %v557 = vadd.f32 %v555, %v556
    %v558 = vmul.f32 %v557, %v149
    %v559 = vsub.f32 %v545, %v558
    %v560 = vmul.f32 %v559, %v559
    %v561 = vsel %vm550, %v560, 0.0
    %v562 = vrot.slane %v561, 4
    %v563 = vadd.f32 %v561, %v562
    %v564 = vrot.slane %v563, 2
    %v565 = vadd.f32 %v563, %v564
    %v566 = vrot.slane %v565, 1
    %v567 = vadd.f32 %v565, %v566
    %v568 = vmul.f32 %v567, %v149
    %vm569 = vcmask 516096
    %570 = vst.msk [vmem:[#allocation8 + $0x4] sm:$0x1] %vm569, %v558
    %571 = vst.msk [vmem:[#allocation8 + $0x5] sm:$0x1] %vm569, %v568
    %v572 = vadd.f32 %v568, 1e-05
    %v573 = vrsqrt.pop %v572
    %v574 = vmul.f32 %v52, %v573
    %v575 = vlaneseq
    %v576 = vshrl.u32 %v575, 7
    %v577 = vsub.s32 4, %v576
    %v578 = vrot.slane %v574, %v577
    %v579 = vmul.f32 %v559, %v578
    %v580 = vlaneseq
    %v581 = vshrl.u32 %v580, 7
    %v582 = vsub.s32 5, %v581
    %v583 = vrot.slane %v52, %v582
    %v584 = vadd.f32 %v579, %v583
    %v585 = vmax.f32 %v584, 0.0
    %v586 = vlaneseq
    %v587 = vshrl.u32 %v586, 7
    %v588 = vsub.s32 6, %v587
    %v589 = vrot.slane %v52, %v588
    %v590 = vmul.f32 %v585, %v589
    %v591 = vsel %vm550, %v590, 0.0
    %592 = vadd.xlane.f32.xlu0 %v591
    %v593 = vpop.xlane.xlu0 %592
    %v594 = vlaneseq
    %v595 = vshrl.u32 %v594, 7
    %v596 = vsub.s32 7, %v595
    %v597 = vrot.slane %v52, %v596
    %v598 = vadd.f32 %v593, %v597
    %vm599 = vcmask 7168
    %600 = vst.msk [vmem:[%s5] sm:$0xff] %vm599, %v598
    // Predicated region
    $region30: #{tpu_custom_call.1} parent=1 // pred_check
      _
    $region31: #{tpu_custom_call.1} parent=1 // pred_check_branch
      %602 = sbr.rel (0) target = $region33
    $region32: #{tpu_custom_call.1} parent=1 // pred_region
      _
    $region33: #{tpu_custom_call.1} parent=1 // pred_fallthru
      _
    // Predicated region
    $region34: #{tpu_custom_call.1} parent=1 // pred_check
      _
    $region35: #{tpu_custom_call.1} parent=1 // pred_check_branch
      %604 = sbr.rel (0) target = $region37
    $region36: #{tpu_custom_call.1} parent=1 // pred_region
      %s606 = ssub.s32 256, 256
      %607 = vsyncadd [#allocation5], %s606
      %s609 = sshll.u32 [#allocation8], 4
      %s610 = int_to_ptr.vmem [resolvable:$true] %s609
      %612 = dma.vmem_to_hbm [thread:$0]  %s610, 256, %s6, [#allocation5]
    $region37: #{tpu_custom_call.1} parent=1 // pred_fallthru
      _
    // Predicated region
    $region38: #{tpu_custom_call.1} parent=1 // pred_check
      _
    $region39: #{tpu_custom_call.1} parent=1 // pred_check_branch
      %614 = sbr.rel (0) target = $region41
    $region40: #{tpu_custom_call.1} parent=1 // pred_region
      _
    $region41: #{tpu_custom_call.1} parent=1 // pred_fallthru
      _
    // Predicated region
    $region42: #{tpu_custom_call.1} parent=1 // pred_check
      _
    $region43: #{tpu_custom_call.1} parent=1 // pred_check_branch
      %616 = sbr.rel (0) target = $region45
    $region44: #{tpu_custom_call.1} parent=1 // pred_region
      %617 = dma.done [#allocation5], 256
    $region45: #{tpu_custom_call.1} parent=1 // pred_fallthru
      _
    %618 = vsyncpa [#allocation4], 1
    %619 = vsyncpa [#allocation7], 1
    %620 = vsyncpa [#allocation5], 1

</llo_original>
